<compile_context>
chip_gen: v6e
topology: v6e:2x2x1
jax: 0.10.0
libtpu: 0.0.40
codegen_flags: <defaults>
</compile_context>

<pallas_src>
import jax
import jax.numpy as jnp
from jax.experimental import pallas as pl
from jax.experimental.pallas import tpu as pltpu


def _round_up(x, m):
    return ((x + m - 1) // m) * m


# ----------------------------------------------------------------------------
# Pallas kernel: fused (W @ patches_T) + bias + LeakyReLU (slope 0.01, the
# torch.nn.LeakyReLU() default).  One grid step = one (batch, L-tile) block.
# ----------------------------------------------------------------------------
def _conv3d_mm_bias_lrelu_kernel(p_ref, w_ref, b_ref, o_ref):
    # p_ref: (CK_pad, TILE_M)  bf16 im2col patches (lane-dense over output positions)
    # w_ref: (C_out, CK_pad)   bf16 flattened conv weight (c_in major, kd/kh/kw minor)
    # b_ref: (C_out, 1)        f32 bias
    # o_ref: (C_out, TILE_M)   f32 output tile
    acc = jnp.dot(w_ref[...], p_ref[...], preferred_element_type=jnp.float32)
    acc = acc + b_ref[...]                       # broadcast bias over lanes
    acc = jnp.where(acc >= 0, acc, 0.01 * acc)   # LeakyReLU (VPU, free under DMA/MXU)
    o_ref[...] = acc.astype(o_ref.dtype)


def _fused_conv_matmul(patches_T, w_mat, b2d, *, tile_m):
    N, CK_pad, L_pad = patches_T.shape
    C_out = w_mat.shape[0]
    return pl.pallas_call(
        _conv3d_mm_bias_lrelu_kernel,
        out_shape=jax.ShapeDtypeStruct((N, C_out, L_pad), jnp.float32),
        grid_spec=pl.GridSpec(
            grid=(N, L_pad // tile_m),
            in_specs=[
                # patches: new (batch, L-tile) block every step; leading dim squeezed.
                pl.BlockSpec((None, CK_pad, tile_m), lambda n, i: (n, 0, i)),
                # weight / bias: tiny, resident across the whole grid.
                pl.BlockSpec((C_out, CK_pad), lambda n, i: (0, 0)),
                pl.BlockSpec((C_out, 1), lambda n, i: (0, 0)),
            ],
            out_specs=pl.BlockSpec((None, C_out, tile_m), lambda n, i: (n, 0, i)),
        ),
        compiler_params=pltpu.CompilerParams(
            dimension_semantics=("parallel", "parallel")),
    )(patches_T, w_mat, b2d)


# ----------------------------------------------------------------------------
# Wrapper reproducing ConvLayer3D.forward with default args
# (activation='LeakyReLU', norm=None, sn=False  =>  conv3d(bias=True) + LeakyReLU)
# ----------------------------------------------------------------------------
def conv_layer_3d(x, weight, bias, *, stride=1, padding=0, tile_m=256):
    """
    x:      (N, C_in, D, H, W)            -- PyTorch NCDHW layout
    weight: (C_out, C_in, Kd, Kh, Kw)     -- PyTorch Conv3d weight layout
    bias:   (C_out,)
    returns (N, C_out, D_out, H_out, W_out)
    """
    if isinstance(stride, int):
        stride = (stride, stride, stride)
    if isinstance(padding, int):
        padding = (padding, padding, padding)

    N, C_in, D, H, W = x.shape
    C_out, _, Kd, Kh, Kw = weight.shape
    sd, sh, sw = stride
    pd, ph, pw = padding
    Do = (D + 2 * pd - Kd) // sd + 1
    Ho = (H + 2 * ph - Kh) // sh + 1
    Wo = (W + 2 * pw - Kw) // sw + 1
    L = Do * Ho * Wo
    CK = C_in * Kd * Kh * Kw

    # --- im2col (glue, plain JAX), built directly in the (CK, L) lane-dense
    # orientation so no big transpose is needed afterwards.
    x_pad = jnp.pad(x, ((0, 0), (0, 0), (pd, pd), (ph, ph), (pw, pw)))
    slices = []
    for kd in range(Kd):
        for kh in range(Kh):
            for kw in range(Kw):
                slices.append(
                    x_pad[:, :, kd:kd + sd * Do:sd,
                                kh:kh + sh * Ho:sh,
                                kw:kw + sw * Wo:sw])
    cols = jnp.stack(slices, axis=2)                  # (N, C_in, K^3, Do, Ho, Wo)
    patches_T = cols.reshape(N, CK, L)                # c_in major, kd/kh/kw minor

    # --- pad to TPU-friendly shapes and cast MXU inputs to bf16 (f32 accumulate).
    tile_m = max(128, min(tile_m, _round_up(L, 128)))
    CK_pad = _round_up(CK, 128)
    L_pad = _round_up(L, tile_m)
    patches_T = jnp.pad(
        patches_T, ((0, 0), (0, CK_pad - CK), (0, L_pad - L))
    ).astype(jnp.bfloat16)
    w_mat = jnp.pad(
        weight.reshape(C_out, CK), ((0, 0), (0, CK_pad - CK))
    ).astype(jnp.bfloat16)
    b2d = bias.reshape(C_out, 1).astype(jnp.float32)

    out_full = _fused_conv_matmul(patches_T, w_mat, b2d, tile_m=tile_m)

    # Already in (N, C_out, L) order: just drop padding and restore spatial dims.
    return out_full[:, :, :L].reshape(N, C_out, Do, Ho, Wo)


if __name__ == "__main__":
    # Small shapes consistent with Conv3d: batch=2, in_channels=4, spatial=8^3,
    # out_channels=8, kernel_size=3, stride=1, padding=1.
    N, C_in, D, H, W = 2, 4, 8, 8, 8
    C_out, K = 8, 3
    stride, padding = 1, 1

    key = jax.random.PRNGKey(0)
    kx, kw_, kb = jax.random.split(key, 3)
    x = jax.random.normal(kx, (N, C_in, D, H, W), dtype=jnp.float32)
    # Deterministic parameter init (uniform, Conv3d-like fan_in scaling).
    fan_in = C_in * K ** 3
    bound = 1.0 / (fan_in ** 0.5)
    weight = jax.random.uniform(kw_, (C_out, C_in, K, K, K), jnp.float32, -bound, bound)
    bias = jax.random.uniform(kb, (C_out,), jnp.float32, -bound, bound)

    out = conv_layer_3d(x, weight, bias, stride=stride, padding=padding)
    out = jax.block_until_ready(out)

    # Pure-JAX reference (conv + bias + LeakyReLU) on the same bf16-rounded inputs
    # the kernel feeds to the MXU (accumulation stays f32 in both paths).
    x_bf = x.astype(jnp.bfloat16).astype(jnp.float32)
    w_bf = weight.astype(jnp.bfloat16).astype(jnp.float32)
    ref = jax.lax.conv_general_dilated(
        x_bf, w_bf,
        window_strides=(stride,) * 3,
        padding=[(padding, padding)] * 3,
        dimension_numbers=("NCDHW", "OIDHW", "NCDHW"),
        precision=jax.lax.Precision.HIGHEST)
    ref = ref + bias[None, :, None, None, None]
    ref = jnp.where(ref >= 0, ref, 0.01 * ref)

    Do = (D + 2 * padding - K) // stride + 1
    assert out.shape == (N, C_out, Do, Do, Do)
    assert jnp.allclose(out, ref, atol=1e-4, rtol=1e-4), float(
        jnp.max(jnp.abs(out - ref)))

    print("KERNEL_OK")
</pallas_src>

<mosaic_0001>
module attributes {stable_mosaic.version = 11 : i64} {
  func.func @_conv3d_mm_bias_lrelu_kernel(%arg0: i32, %arg1: i32, %arg2: memref<1x128x256xbf16, #tpu.memory_space<vmem>>, %arg3: memref<8x128xbf16, #tpu.memory_space<vmem>>, %arg4: memref<8x1xf32, #tpu.memory_space<vmem>>, %arg5: memref<1x8x256xf32, #tpu.memory_space<vmem>>) attributes {dimension_semantics = [#tpu.dimension_semantics<parallel>, #tpu.dimension_semantics<parallel>], iteration_bounds = array<i64: 2, 2>, scalar_prefetch = 0 : i64, scratch_operands = 0 : i64, tpu.core_type = #tpu.core_type<tc>, window_params = [{transform_indices = @transform_0, window_bounds = array<i64: 1, 128, 256>}, {pipeline_mode = #tpu.pipeline_mode<synchronous>, transform_indices = @transform_1, window_bounds = array<i64: 8, 128>}, {pipeline_mode = #tpu.pipeline_mode<synchronous>, transform_indices = @transform_2, window_bounds = array<i64: 8, 1>}, {transform_indices = @transform_3, window_bounds = array<i64: 1, 8, 256>}]} {
    %c0 = arith.constant 0 : index
    %c0_0 = arith.constant 0 : index
    %0 = vector.load %arg3[%c0, %c0_0] : memref<8x128xbf16, #tpu.memory_space<vmem>>, vector<8x128xbf16>
    %c0_1 = arith.constant 0 : index
    %c0_2 = arith.constant 0 : index
    %c0_3 = arith.constant 0 : index
    %1 = vector.load %arg2[%c0_1, %c0_2, %c0_3] : memref<1x128x256xbf16, #tpu.memory_space<vmem>>, vector<1x128x256xbf16>
    %2 = vector.shape_cast %1 : vector<1x128x256xbf16> to vector<128x256xbf16>
    %cst = arith.constant dense<0.000000e+00> : vector<8x256xf32>
    %3 = tpu.matmul %0, %2, %cst {dimension_numbers = #tpu.dot_dimension_numbers<[1], [0], [0], [1], [0, 0, 1, 1], [], []>} : vector<8x128xbf16>, vector<128x256xbf16>, vector<8x256xf32> -> vector<8x256xf32>
    %c0_4 = arith.constant 0 : index
    %c0_5 = arith.constant 0 : index
    %4 = vector.load %arg4[%c0_4, %c0_5] : memref<8x1xf32, #tpu.memory_space<vmem>>, vector<8x1xf32>
    %5 = vector.broadcast %4 : vector<8x1xf32> to vector<8x256xf32>
    %6 = arith.addf %3, %5 : vector<8x256xf32>
    %cst_6 = arith.constant 0.000000e+00 : f32
    %7 = vector.broadcast %cst_6 : f32 to vector<8x256xf32>
    %8 = arith.cmpf oge, %6, %7 : vector<8x256xf32>
    %cst_7 = arith.constant 0.00999999977 : f32
    %9 = vector.broadcast %cst_7 : f32 to vector<8x256xf32>
    %10 = arith.mulf %9, %6 : vector<8x256xf32>
    %11 = arith.select %8, %6, %10 : vector<8x256xi1>, vector<8x256xf32>
    %c0_8 = arith.constant 0 : index
    %c0_9 = arith.constant 0 : index
    %c0_10 = arith.constant 0 : index
    %12 = vector.load %arg5[%c0_8, %c0_9, %c0_10] : memref<1x8x256xf32, #tpu.memory_space<vmem>>, vector<1x8x256xf32>
    %13 = vector.shape_cast %12 : vector<1x8x256xf32> to vector<8x256xf32>
    %14 = vector.shape_cast %11 : vector<8x256xf32> to vector<1x8x256xf32>
    tpu.vector_store %arg5[%c0_8, %c0_9, %c0_10], %14 {strides = array<i32>} : memref<1x8x256xf32, #tpu.memory_space<vmem>>, vector<1x8x256xf32>,
    return
  }
  func.func @transform_0(%arg0: i32, %arg1: i32) -> (i32, i32, i32) {
    %c0_i32 = arith.constant 0 : i32
    %c0_i32_0 = arith.constant 0 : i32
    return %arg0, %c0_i32, %arg1 : i32, i32, i32
  }
  func.func @transform_1(%arg0: i32, %arg1: i32) -> (i32, i32) {
    %c0_i32 = arith.constant 0 : i32
    %c0_i32_0 = arith.constant 0 : i32
    %c0_i32_1 = arith.constant 0 : i32
    return %c0_i32, %c0_i32_0 : i32, i32
  }
  func.func @transform_2(%arg0: i32, %arg1: i32) -> (i32, i32) {
    %c0_i32 = arith.constant 0 : i32
    %c0_i32_0 = arith.constant 0 : i32
    %c0_i32_1 = arith.constant 0 : i32
    return %c0_i32, %c0_i32_0 : i32, i32
  }
  func.func @transform_3(%arg0: i32, %arg1: i32) -> (i32, i32, i32) {
    %c0_i32 = arith.constant 0 : i32
    %c0_i32_0 = arith.constant 0 : i32
    return %arg0, %c0_i32, %arg1 : i32, i32, i32
  }
}

</mosaic_0001>

<llo_original>
// kernel: tpu_custom_call.1
$region0: #{tpu_custom_call.1}
  #allocation0 [shape = 'u32[]', space=smem, size = 0x4, offset = 0x4, fixed_abs, tag = 'smem constant byte address 0x4 - core index']
  #allocation1 [shape = 'u32[144,128]{1,0:T(1,128)}', space=vmem, size = 0x12000, scoped, tag = 'internal scratch']
  %s0 = inlined_call_operand.hbm [shape: bf16[2,128,512], index: 0, kind: input, shape index: {}]
  %s1 = inlined_call_operand.vmem [shape: bf16[8,128], index: 1, kind: input, shape index: {}]
  %s2 = inlined_call_operand.vmem [shape: f32[8,1], index: 2, kind: input, shape index: {}]
  %s3 = inlined_call_operand.hbm [shape: f32[2,8,512], index: 3, kind: output, shape index: {}]
  %s4 = sld [smem:[#allocation0]]
  $region49: #{tpu_custom_call.1} parent=0
    _
  %s6 = ssub.s32 1, %s4
  %s7 = scalar_select 0, %s6, %s4
  $region1: #{tpu_custom_call.1} parent=0
    #allocation2 [shape = 'u8[131072]{0}', space=vmem, size = 0x20000, scoped, tag = 'input window, operand 0']
    #allocation3 [shape = 's32[2]{0}', space=sflag, size = 0x8, scoped, tag = 'scoped memory for tpu_custom_call.1']
    #allocation4 [shape = 's32[2]{0}', space=sflag, size = 0x8, scoped, tag = 'scoped memory for tpu_custom_call.1']
    #allocation5 [shape = 'u8[16384]{0}', space=vmem, size = 0x4000, scoped, tag = 'output window, operand 0']
    %8 = vsyncpa [#allocation3], 0
    %s9 = scalar_lea.sflag [#allocation3], 1
    %10 = vsyncpa %s9, 0
    %11 = vsyncpa [#allocation4], 0
    %s12 = scalar_lea.sflag [#allocation4], 1
    %13 = vsyncpa %s12, 0
    loop: start=0, step=1, limit=6
    $region2: #{tpu_custom_call.1} parent=1 // loop_pre_header
      _
    $region3: #{tpu_custom_call.1} parent=1 // loop_header
      %s15 = sphi 0, %s19
      %p16 = scmp.ge.s32.totalorder %s15, 6
      %s22 = sphi 0, %s34
      %s23 = sphi 0, %s30
      %s24 = sphi 0, %s22
      %s25 = sphi 0, %s23
      %s26 = sphi 0, %s24
      %s27 = sphi 0, %s25
      %s39 = sphi 0, %s41
      %s42 = sphi 0, %s39
      %s43 = sphi 0, %s42
      %s59 = sphi 0, %s43
      %s63 = sphi 0, %s63
      %s65 = sphi 0, %s63
      %s66 = sphi 0, %s65
      %s80 = sphi 0, %s66
      %s84 = sphi 0, %s84
      %s86 = sphi 0, %s84
      %s87 = sphi 0, %s86
      %s101 = sphi 0, %s87
      %s109 = sphi 0, %s111
      %s112 = sphi 0, %s109
      %s113 = sphi 0, %s112
      %s129 = sphi 0, %s113
    $region4: #{tpu_custom_call.1} parent=1 // loop_header_branch
      %18 = sbr.rel (%p16) target = $region8
    $region5: #{tpu_custom_call.1} parent=1 // loop_body
      %s20 = ssub.s32 %s15, 1
      %s21 = ssub.s32 %s15, 2
      %s28 = sadd.s32 1, %s23
      %p29 = scmp.ge.s32.totalorder %s28, 2
      %s30 = scalar_select %p29, 0, %s28
      %s31 = sadd.s32 1, %s22
      %s32 = scalar_select %p29, %s31, %s22
      %p33 = scmp.ge.s32.totalorder %s32, 2
      %s34 = scalar_select %p33, 0, %s32
      %s35 = ssub.s32 %s22, %s34
      %s36 = ssub.s32 %s23, %s30
      %s37 = sor.u32 %s35, %s36
      %p38 = scmp.eq.s32.totalorder %s37, 0
      %s40 = sadd.s32 %s39, 1
      %s41 = scalar_select %p38, %s39, %s40
      %p44 = pneg %p38
      %p45 = scmp.eq.s32.totalorder %s15, 3
      %p46 = por %p44, %p45
      %p47 = scmp.ne.s32.totalorder %s39, %s42
      %p48 = scmp.eq.s32.totalorder %s15, 0
      %p49 = por %p47, %p48
      %p50 = scmp.ne.s32.totalorder %s39, %s42
      %p51 = scmp.eq.s32.totalorder %s20, 3
      %p52 = por %p50, %p51
      %p53 = scmp.ne.s32.totalorder %s42, %s43
      %p54 = scmp.eq.s32.totalorder %s20, 0
      %p55 = por %p53, %p54
      %p56 = scmp.ne.s32.totalorder %s42, %s43
      %p57 = scmp.eq.s32.totalorder %s21, 3
      %p58 = por %p56, %p57
      %p60 = scmp.ne.s32.totalorder %s43, %s59
      %p61 = scmp.eq.s32.totalorder %s21, 0
      %p62 = por %p60, %p61
      %s64 = sadd.s32 %s63, 1
      %p67 = scmp.eq.s32.totalorder %s15, 3
      %p68 = scmp.ne.s32.totalorder %s63, %s65
      %p69 = scmp.eq.s32.totalorder %s15, 0
      %p70 = por %p68, %p69
      %p71 = scmp.ne.s32.totalorder %s63, %s65
      %p72 = scmp.eq.s32.totalorder %s20, 3
      %p73 = por %p71, %p72
      %p74 = scmp.ne.s32.totalorder %s65, %s66
      %p75 = scmp.eq.s32.totalorder %s20, 0
      %p76 = por %p74, %p75
      %p77 = scmp.ne.s32.totalorder %s65, %s66
      %p78 = scmp.eq.s32.totalorder %s21, 3
      %p79 = por %p77, %p78
      %p81 = scmp.ne.s32.totalorder %s66, %s80
      %p82 = scmp.eq.s32.totalorder %s21, 0
      %p83 = por %p81, %p82
      %s85 = sadd.s32 %s84, 1
      %p88 = scmp.eq.s32.totalorder %s15, 3
      %p89 = scmp.ne.s32.totalorder %s84, %s86
      %p90 = scmp.eq.s32.totalorder %s15, 0
      %p91 = por %p89, %p90
      %p92 = scmp.ne.s32.totalorder %s84, %s86
      %p93 = scmp.eq.s32.totalorder %s20, 3
      %p94 = por %p92, %p93
      %p95 = scmp.ne.s32.totalorder %s86, %s87
      %p96 = scmp.eq.s32.totalorder %s20, 0
      %p97 = por %p95, %p96
      %p98 = scmp.ne.s32.totalorder %s86, %s87
      %p99 = scmp.eq.s32.totalorder %s21, 3
      %p100 = por %p98, %p99
      %p102 = scmp.ne.s32.totalorder %s87, %s101
      %p103 = scmp.eq.s32.totalorder %s21, 0
      %p104 = por %p102, %p103
      %s105 = ssub.s32 %s22, %s34
      %s106 = ssub.s32 %s23, %s30
      %s107 = sor.u32 %s105, %s106
      %p108 = scmp.eq.s32.totalorder %s107, 0
      %s110 = sadd.s32 %s109, 1
      %s111 = scalar_select %p108, %s109, %s110
      %p114 = pneg %p108
      %p115 = scmp.eq.s32.totalorder %s15, 3
      %p116 = por %p114, %p115
      %p117 = scmp.ne.s32.totalorder %s109, %s112
      %p118 = scmp.eq.s32.totalorder %s15, 0
      %p119 = por %p117, %p118
      %p120 = scmp.ne.s32.totalorder %s109, %s112
      %p121 = scmp.eq.s32.totalorder %s20, 3
      %p122 = por %p120, %p121
      %p123 = scmp.ne.s32.totalorder %s112, %s113
      %p124 = scmp.eq.s32.totalorder %s20, 0
      %p125 = por %p123, %p124
      %p126 = scmp.ne.s32.totalorder %s112, %s113
      %p127 = scmp.eq.s32.totalorder %s21, 3
      %p128 = por %p126, %p127
      %p130 = scmp.ne.s32.totalorder %s113, %s129
      %p131 = scmp.eq.s32.totalorder %s21, 0
      %p132 = por %p130, %p131
      %p133 = scmp.le.s32.totalorder 1, %s15
      %p134 = scmp.lt.s32.totalorder %s15, 5
      %p135 = pnand %p133, %p134
      %p136 = pneg %p135
      // Predicated region
      $region9: #{tpu_custom_call.1} parent=5 // pred_check
        _
      $region10: #{tpu_custom_call.1} parent=5 // pred_check_branch
        %138 = sbr.rel (%p135) target = $region12
      $region11: #{tpu_custom_call.1} parent=5 // pred_region
        %s139 = ssub.s32 %s15, 1
        // Predicated region
        $region13: #{tpu_custom_call.1} parent=11 // pred_check
          %p140 = pneg %p76
        $region14: #{tpu_custom_call.1} parent=11 // pred_check_branch
          %142 = sbr.rel (%p140) target = $region16
        $region15: #{tpu_custom_call.1} parent=11 // pred_region
          _
        $region16: #{tpu_custom_call.1} parent=11 // pred_fallthru
          _
        // Predicated region
        $region17: #{tpu_custom_call.1} parent=11 // pred_check
          %p143 = pneg %p97
        $region18: #{tpu_custom_call.1} parent=11 // pred_check_branch
          %145 = sbr.rel (%p143) target = $region20
        $region19: #{tpu_custom_call.1} parent=11 // pred_region
          _
        $region20: #{tpu_custom_call.1} parent=11 // pred_fallthru
          _
      $region12: #{tpu_custom_call.1} parent=5 // pred_fallthru
        _
      %p146 = scmp.lt.s32.totalorder %s15, 4
      // Predicated region
      $region21: #{tpu_custom_call.1} parent=5 // pred_check
        %p147 = pneg %p146
      $region22: #{tpu_custom_call.1} parent=5 // pred_check_branch
        %149 = sbr.rel (%p147) target = $region24
      $region23: #{tpu_custom_call.1} parent=5 // pred_region
        // Predicated region
        $region25: #{tpu_custom_call.1} parent=23 // pred_check
          %p150 = pneg %p49
        $region26: #{tpu_custom_call.1} parent=23 // pred_check_branch
          %152 = sbr.rel (%p150) target = $region28
        $region27: #{tpu_custom_call.1} parent=23 // pred_region
          %s153 = sand.u32 %s39, 1
          %s154 = scalar_lea.sflag [#allocation3], %s153
          %s155 = sand.u32 %s39, 1
          %s156 = smul.addr %s155, 128
          %s157 = scalar_lea.vmem [#allocation2], %s156
          %s158 = smul.u32 2, %s23
          %s160 = ssub.s32 2048, 2048
          %161 = vsyncadd %s154, %s160
          %s162 = smul.addr %s22, 64
          %s163 = sadd.s32 %s158, %s162
          %s164 = smul.addr %s163, 64
          %s165 = scalar_lea.hbm %s0, %s164
          %s166 = sshll.u32 %s157, 4
          %s167 = int_to_ptr.vmem [resolvable:$true] %s166
          %172 = dma.hbm_to_vmem [thread:$0]  %s165, 2048, %s167, %s154, 256, 128, 8
        $region28: #{tpu_custom_call.1} parent=23 // pred_fallthru
          _
      $region24: #{tpu_custom_call.1} parent=5 // pred_fallthru
        _
      %p173 = scmp.le.s32.totalorder 1, %s15
      %p174 = scmp.lt.s32.totalorder %s15, 5
      %p175 = pnand %p173, %p174
      %p176 = pneg %p175
      // Predicated region
      $region29: #{tpu_custom_call.1} parent=5 // pred_check
        _
      $region30: #{tpu_custom_call.1} parent=5 // pred_check_branch
        %178 = sbr.rel (%p175) target = $region32
      $region31: #{tpu_custom_call.1} parent=5 // pred_region
        %s179 = ssub.s32 %s15, 1
        %s180 = sand.u32 %s42, 1
        %s181 = scalar_lea.sflag [#allocation3], %s180
        %s182 = sand.u32 %s42, 1
        %s183 = smul.addr %s182, 128
        %s184 = scalar_lea.vmem [#allocation2], %s183
        // Predicated region
        $region33: #{tpu_custom_call.1} parent=31 // pred_check
          %p185 = pneg %p55
        $region34: #{tpu_custom_call.1} parent=31 // pred_check_branch
          %187 = sbr.rel (%p185) target = $region36
        $region35: #{tpu_custom_call.1} parent=31 // pred_region
          %188 = dma.done %s181, 2048
        $region36: #{tpu_custom_call.1} parent=31 // pred_fallthru
          _
        %s189 = sand.u32 %s42, 1
        %s190 = scalar_lea.sflag [#allocation3], %s189
        %s191 = sand.u32 %s42, 1
        %s192 = smul.addr %s191, 128
        %s193 = scalar_lea.vmem [#allocation2], %s192
        %p194 = pneg %p55
        %p195 = pneg %p52
        %p196 = pneg %p76
        %p197 = pneg %p73
        %p198 = pneg %p97
        %p199 = pneg %p94
        %p200 = pneg %p125
        %p201 = pneg %p122
        %s202 = sand.u32 %s112, 1
        %s203 = scalar_lea.sflag [#allocation4], %s202
        %s204 = sand.u32 %s112, 1
        %s205 = smul.addr %s204, 16
        %s206 = scalar_lea.vmem [#allocation5], %s205
        %s207 = smul.u32 2, %s25
        %s208 = smul.u32 2, %s25
        %v210 = vld [vmem:[%s1] sm:$0xf]
        %v211 = vld [vmem:[%s184] sm:$0xff]
        %v212 = vld [vmem:[%s184 + $0x8] sm:$0xff]
        %v213 = vld [vmem:[%s184 + $0x10] sm:$0xff]
        %v214 = vld [vmem:[%s184 + $0x18] sm:$0xff]
        %v215 = vld [vmem:[%s184 + $0x20] sm:$0xff]
        %v216 = vld [vmem:[%s184 + $0x28] sm:$0xff]
        %v217 = vld [vmem:[%s184 + $0x30] sm:$0xff]
        %v218 = vld [vmem:[%s184 + $0x38] sm:$0xff]
        %v219 = vld [vmem:[%s184 + $0x40] sm:$0xff]
        %v220 = vld [vmem:[%s184 + $0x48] sm:$0xff]
        %v221 = vld [vmem:[%s184 + $0x50] sm:$0xff]
        %v222 = vld [vmem:[%s184 + $0x58] sm:$0xff]
        %v223 = vld [vmem:[%s184 + $0x60] sm:$0xff]
        %v224 = vld [vmem:[%s184 + $0x68] sm:$0xff]
        %v225 = vld [vmem:[%s184 + $0x70] sm:$0xff]
        %v226 = vld [vmem:[%s184 + $0x78] sm:$0xff]
        %v227 = vld [vmem:[%s2] sm:$0xff]
        %229 = vset.pattern.permute.xlu0 0
        %230 = vperm.xlu0 %229, %v227
        %v231 = vpop.permute.xlu0 %230
        %v249 = vunpack.c.l.b16 %v211
        %v250 = vunpack.c.h.b16 %v211
        %v251 = vunpack.c.l.b16 %v212
        %v252 = vunpack.c.h.b16 %v212
        %v253 = vunpack.c.l.b16 %v213
        %v254 = vunpack.c.h.b16 %v213
        %v255 = vunpack.c.l.b16 %v214
        %v256 = vunpack.c.h.b16 %v214
        %v257 = vunpack.c.l.b16 %v215
        %v258 = vunpack.c.h.b16 %v215
        %v259 = vunpack.c.l.b16 %v216
        %v260 = vunpack.c.h.b16 %v216
        %v261 = vunpack.c.l.b16 %v217
        %v262 = vunpack.c.h.b16 %v217
        %v263 = vunpack.c.l.b16 %v218
        %v264 = vunpack.c.h.b16 %v218
        %v265 = vunpack.c.l.b16 %v219
        %v266 = vunpack.c.h.b16 %v219
        %v267 = vunpack.c.l.b16 %v220
        %v268 = vunpack.c.h.b16 %v220
        %v269 = vunpack.c.l.b16 %v221
        %v270 = vunpack.c.h.b16 %v221
        %v271 = vunpack.c.l.b16 %v222
        %v272 = vunpack.c.h.b16 %v222
        %v273 = vunpack.c.l.b16 %v223
        %v274 = vunpack.c.h.b16 %v223
        %v275 = vunpack.c.l.b16 %v224
        %v276 = vunpack.c.h.b16 %v224
        %v277 = vunpack.c.l.b16 %v225
        %v278 = vunpack.c.h.b16 %v225
        %v279 = vunpack.c.l.b16 %v226
        %v280 = vunpack.c.h.b16 %v226
        %v281 = vpack.c.b16 %v251, %v249
        %v282 = vpack.c.b16 %v252, %v250
        %v283 = vpack.c.b16 %v255, %v253
        %v284 = vpack.c.b16 %v256, %v254
        %v285 = vpack.c.b16 %v259, %v257
        %v286 = vpack.c.b16 %v260, %v258
        %v287 = vpack.c.b16 %v263, %v261
        %v288 = vpack.c.b16 %v264, %v262
        %v289 = vpack.c.b16 %v267, %v265
        %v290 = vpack.c.b16 %v268, %v266
        %v291 = vpack.c.b16 %v271, %v269
        %v292 = vpack.c.b16 %v272, %v270
        %v293 = vpack.c.b16 %v275, %v273
        %v294 = vpack.c.b16 %v276, %v274
        %v295 = vpack.c.b16 %v279, %v277
        %v296 = vpack.c.b16 %v280, %v278
        %313 = vmatprep.subr.bf16.mxu0 %v296
        %314 = vmatpush1.bf16.msra.mxu0 %v295
        %315 = vmatprep.subr.bf16.mxu0 %v294
        %316 = vmatpush1.bf16.msra.mxu0 %v293
        %317 = vmatprep.subr.bf16.mxu0 %v292
        %318 = vmatpush1.bf16.msra.mxu0 %v291
        %319 = vmatprep.subr.bf16.mxu0 %v290
        %320 = vmatpush1.bf16.msra.mxu0 %v289
        %321 = vmatprep.subr.bf16.mxu0 %v288
        %322 = vmatpush1.bf16.msra.mxu0 %v287
        %323 = vmatprep.subr.bf16.mxu0 %v286
        %324 = vmatpush1.bf16.msra.mxu0 %v285
        %325 = vmatprep.subr.bf16.mxu0 %v284
        %326 = vmatpush1.bf16.msra.mxu0 %v283
        %327 = vmatprep.subr.bf16.mxu0 %v282
        %328 = vmatpush1.bf16.msra.mxu0 %v281
        %329 = vmatprep.subr.bf16.mxu0 0
        %330 = vmatpush2.bf16.msra.mxu0 0
        %331 = vmatprep.subr.bf16.mxu0 0
        %332 = vmatpush2.bf16.msra.mxu0 0
        %333 = vmatprep.subr.bf16.mxu0 0
        %334 = vmatpush2.bf16.msra.mxu0 0
        %335 = vmatprep.subr.bf16.mxu0 0
        %336 = vmatpush2.bf16.msra.mxu0 0
        %337 = vmatprep.subr.bf16.mxu0 0
        %338 = vmatpush2.bf16.msra.mxu0 0
        %339 = vmatprep.subr.bf16.mxu0 0
        %340 = vmatpush2.bf16.msra.mxu0 0
        %341 = vmatprep.subr.bf16.mxu0 0
        %342 = vmatpush2.bf16.msra.mxu0 0
        %343 = vmatprep.subr.bf16.mxu0 0
        %344 = vmatpush2.bf16.msra.mxu0 0
        %345 = vmatprep.mubr.bf16.mxu0 0
        %346 = vmatmul.mubr.bf16.gmra.mxu0 %v210
        %v347 = vpop.f32.mrf.mxu0
        %v348 = vadd.f32 %v231, %v347
        %v349 = vpop.f32.mrf.mxu0
        %v350 = vadd.f32 %v231, %v349
        %v351 = vpop.f32.mrf.mxu0
        %v352 = vpop.f32.mrf.mxu0
        %353 = vdwg.mxu0
        %vm354 = vcmp.ge.f32.partialorder %v348, 0.0
        %vm355 = vcmp.ge.f32.partialorder %v350, 0.0
        %v356 = vmul.f32 %v348, 0.01
        %v357 = vmul.f32 %v350, 0.01
        %v358 = vsel %vm354, %v348, %v356
        %v359 = vsel %vm355, %v350, %v357
        %360 = vst [vmem:[%s206] sm:$0xff] %v358
        %361 = vst [vmem:[%s206 + $0x8] sm:$0xff] %v359
        %s362 = sand.u32 %s112, 1
        %s363 = scalar_lea.sflag [#allocation4], %s362
        %s364 = sand.u32 %s112, 1
        %s365 = smul.addr %s364, 16
        %s366 = scalar_lea.vmem [#allocation5], %s365
        // Predicated region
        $region37: #{tpu_custom_call.1} parent=31 // pred_check
          %p367 = pneg %p122
        $region38: #{tpu_custom_call.1} parent=31 // pred_check_branch
          %369 = sbr.rel (%p367) target = $region40
        $region39: #{tpu_custom_call.1} parent=31 // pred_region
          %s370 = smul.u32 2, %s25
          %s372 = ssub.s32 256, 256
          %373 = vsyncadd %s363, %s372
          %s374 = smul.addr %s24, 4
          %s375 = sadd.s32 %s370, %s374
          %s376 = smul.addr %s375, 128
          %s377 = scalar_lea.hbm %s3, %s376
          %s379 = sshll.u32 %s366, 4
          %s380 = int_to_ptr.vmem [resolvable:$true] %s379
          %382 = dma.vmem_to_hbm [thread:$0]  %s380, 256, %s377, %s363
        $region40: #{tpu_custom_call.1} parent=31 // pred_fallthru
          _
      $region32: #{tpu_custom_call.1} parent=5 // pred_fallthru
        _
      %p383 = scmp.le.s32.totalorder 2, %s15
      // Predicated region
      $region41: #{tpu_custom_call.1} parent=5 // pred_check
        %p384 = pneg %p383
      $region42: #{tpu_custom_call.1} parent=5 // pred_check_branch
        %386 = sbr.rel (%p384) target = $region44
      $region43: #{tpu_custom_call.1} parent=5 // pred_region
        %s387 = ssub.s32 %s15, 2
        // Predicated region
        $region45: #{tpu_custom_call.1} parent=43 // pred_check
          %p388 = pneg %p128
        $region46: #{tpu_custom_call.1} parent=43 // pred_check_branch
          %390 = sbr.rel (%p388) target = $region48
        $region47: #{tpu_custom_call.1} parent=43 // pred_region
          %s391 = sand.u32 %s113, 1
          %s392 = scalar_lea.sflag [#allocation4], %s391
          %s393 = sand.u32 %s113, 1
          %s394 = smul.addr %s393, 16
          %s395 = scalar_lea.vmem [#allocation5], %s394
          %396 = dma.done %s392, 256
        $region48: #{tpu_custom_call.1} parent=43 // pred_fallthru
          _
      $region44: #{tpu_custom_call.1} parent=5 // pred_fallthru
        _
    $region6: #{tpu_custom_call.1} parent=1 // loop_footer
      %s19 = sadd.s32 1, %s15
    $region7: #{tpu_custom_call.1} parent=1 // loop_footer_branch
      %14 = sbr.rel target = $region3
    $region8: #{tpu_custom_call.1} parent=1 // loop_exit
      _
    %397 = vsyncpa [#allocation3], 1
    %s398 = scalar_lea.sflag [#allocation3], 1
    %399 = vsyncpa %s398, 1
    %400 = vsyncpa [#allocation4], 1
    %s401 = scalar_lea.sflag [#allocation4], 1
    %402 = vsyncpa %s401, 1

</llo_original>
